<compile_context>
chip_gen: v7x
topology: tpu7x:2x2x1
jax: 0.10.0
libtpu: 0.0.40
codegen_flags: <defaults>
</compile_context>

<pallas_src>
import jax
import jax.numpy as jnp
from jax import lax
from jax.experimental import pallas as pl
from jax.experimental.pallas import tpu as pltpu


def _round_up(x, m):
    return ((x + m - 1) // m) * m


def _mlp_bias_kernel(x_ref, w1_ref, w2_ref, b_ref, o_ref, acc_ref):
    # x_ref:   (tm, H)      token tile (resident across the k axis)
    # w1_ref:  (tk, H)      fc1 weight slab, PyTorch layout (rows of W1)
    # w2_ref:  (H, tk)      fc2 weight slab, PyTorch layout (cols of W2)
    # b_ref:   (1, H)       partial_bias
    # o_ref:   (tm, H)      output tile (written only on the last k step)
    # acc_ref: (tm, H) f32  accumulator scratch
    k = pl.program_id(1)

    @pl.when(k == 0)
    def _():
        acc_ref[...] = jnp.zeros_like(acc_ref)

    # fc1 chunk: x @ W1_slab^T  -> (tm, tk)   (contract last dims on MXU)
    h = lax.dot_general(
        x_ref[...], w1_ref[...],
        dimension_numbers=(((1,), (1,)), ((), ())),
        preferred_element_type=jnp.float32)

    # fc2 chunk: h @ W2_slab^T  -> (tm, H), accumulated over the 4H axis.
    acc_ref[...] += lax.dot_general(
        h.astype(w2_ref.dtype), w2_ref[...],
        dimension_numbers=(((1,), (1,)), ((), ())),
        preferred_element_type=jnp.float32)

    @pl.when(k == pl.num_programs(1) - 1)
    def _():
        o_ref[...] = (acc_ref[...] + b_ref[...]).astype(o_ref.dtype)


def ptb_functional_mlp(x, w1, w2, partial_bias, *, tm=256, tk=512):
    """x: (..., H).  w1: (4H, H), w2: (H, 4H)  (PyTorch nn.Linear layout)."""
    H = x.shape[-1]
    H4 = w1.shape[0]
    assert w1.shape == (H4, H) and w2.shape == (H, H4)
    assert partial_bias.shape == (H,)

    lead_shape = x.shape[:-1]
    x2d = x.reshape(-1, H)
    M = x2d.shape[0]

    # --- token-tile choice: big tiles for MXU occupancy, pad the tail ---
    tm_eff = min(tm, _round_up(M, 8))          # keep sublane-aligned (f32: 8)
    M_pad = _round_up(M, tm_eff)
    if M_pad != M:
        x2d = jnp.pad(x2d, ((0, M_pad - M), (0, 0)))

    # --- 4H-tile choice: largest clean divisor of H4 up to tk ---
    tk_eff = H4
    for cand in (tk, 1024, 512, 256, 128):
        if cand <= H4 and H4 % cand == 0:
            tk_eff = cand
            break

    grid = (M_pad // tm_eff, H4 // tk_eff)
    b2d = partial_bias.reshape(1, H)

    itemsize = jnp.dtype(x.dtype).itemsize
    cost = pl.CostEstimate(
        flops=4 * M_pad * H * H4,                       # two matmuls
        transcendentals=0,
        bytes_accessed=(x2d.size + w1.size + w2.size + b2d.size) * itemsize
                       + M_pad * H * itemsize)

    out2d = pl.pallas_call(
        _mlp_bias_kernel,
        out_shape=jax.ShapeDtypeStruct((M_pad, H), x.dtype),
        grid_spec=pltpu.PrefetchScalarGridSpec(
            num_scalar_prefetch=0,
            grid=grid,
            in_specs=[
                pl.BlockSpec((tm_eff, H), lambda i, k: (i, 0)),   # x rows (resident over k)
                pl.BlockSpec((tk_eff, H), lambda i, k: (k, 0)),   # W1 slab
                pl.BlockSpec((H, tk_eff), lambda i, k: (0, k)),   # W2 slab
                pl.BlockSpec((1, H), lambda i, k: (0, 0)),        # bias (tiny, constant)
            ],
            out_specs=pl.BlockSpec((tm_eff, H), lambda i, k: (i, 0)),
            scratch_shapes=[pltpu.VMEM((tm_eff, H), jnp.float32)],
        ),
        compiler_params=pltpu.CompilerParams(
            dimension_semantics=("parallel", "arbitrary"),
            vmem_limit_bytes=64 * 1024 * 1024),
        cost_estimate=cost,
    )(x2d, w1, w2, b2d)

    return out2d[:M].reshape(*lead_shape, H)


def _reference(x, w1, w2, partial_bias):
    h = jnp.einsum("...h,fh->...f", x, w1)          # fc1: x @ W1^T
    y = jnp.einsum("...f,hf->...h", h, w2)          # fc2: h @ W2^T
    return y + partial_bias


if __name__ == "__main__":
    hidden_size = 32
    batch, seq = 2, 8

    key = jax.random.PRNGKey(0)
    k_x, k_w1, k_w2, k_b, k_x2 = jax.random.split(key, 5)

    x = jax.random.normal(k_x, (batch, seq, hidden_size), dtype=jnp.float32)
    # Deterministic parameter init (shapes from nn.Linear / nn.Parameter):
    w1 = jax.random.normal(k_w1, (hidden_size * 4, hidden_size),
                           dtype=jnp.float32) * (1.0 / hidden_size ** 0.5)
    w2 = jax.random.normal(k_w2, (hidden_size, hidden_size * 4),
                           dtype=jnp.float32) * (1.0 / (4 * hidden_size) ** 0.5)
    partial_bias = jax.random.normal(k_b, (hidden_size,), dtype=jnp.float32)

    out = ptb_functional_mlp(x, w1, w2, partial_bias)
    out = jax.block_until_ready(out)
    ref = _reference(x, w1, w2, partial_bias)
    assert out.shape == (batch, seq, hidden_size)
    assert jnp.allclose(out, ref, atol=1e-4, rtol=1e-4), "mismatch vs reference"

    # Second check: token count NOT divisible by the tile -> exercises padding.
    x_odd = jax.random.normal(k_x2, (3, 5, hidden_size), dtype=jnp.float32)
    out_odd = jax.block_until_ready(ptb_functional_mlp(x_odd, w1, w2, partial_bias))
    ref_odd = _reference(x_odd, w1, w2, partial_bias)
    assert out_odd.shape == (3, 5, hidden_size)
    assert jnp.allclose(out_odd, ref_odd, atol=1e-4, rtol=1e-4), "mismatch (padded tail)"

    print("KERNEL_OK")
</pallas_src>

<mosaic_0001>
module attributes {stable_mosaic.version = 11 : i64} {
  func.func @_mlp_bias_kernel(%arg0: i32, %arg1: i32, %arg2: memref<16x32xf32, #tpu.memory_space<vmem>>, %arg3: memref<128x32xf32, #tpu.memory_space<vmem>>, %arg4: memref<32x128xf32, #tpu.memory_space<vmem>>, %arg5: memref<1x32xf32, #tpu.memory_space<vmem>>, %arg6: memref<16x32xf32, #tpu.memory_space<vmem>>, %arg7: memref<16x32xf32, #tpu.memory_space<vmem>>) attributes {dimension_semantics = [#tpu.dimension_semantics<parallel>, #tpu.dimension_semantics<arbitrary>], iteration_bounds = array<i64: 1, 1>, scalar_prefetch = 0 : i64, scratch_operands = 1 : i64, tpu.core_type = #tpu.core_type<tc>, window_params = [{transform_indices = @transform_0, window_bounds = array<i64: 16, 32>}, {transform_indices = @transform_1, window_bounds = array<i64: 128, 32>}, {transform_indices = @transform_2, window_bounds = array<i64: 32, 128>}, {pipeline_mode = #tpu.pipeline_mode<synchronous>, transform_indices = @transform_3, window_bounds = array<i64: 1, 32>}, {transform_indices = @transform_4, window_bounds = array<i64: 16, 32>}]} {
    %c0_i32 = arith.constant 0 : i32
    %0 = arith.cmpi eq, %arg1, %c0_i32 : i32
    %1 = arith.extui %0 : i1 to i32
    %c0_i32_0 = arith.constant 0 : i32
    %2 = arith.cmpi ne, %1, %c0_i32_0 : i32
    scf.if %2 {
      %cst_13 = arith.constant 0.000000e+00 : f32
      %14 = vector.broadcast %cst_13 : f32 to vector<16x32xf32>
      %c0_14 = arith.constant 0 : index
      %c0_15 = arith.constant 0 : index
      %15 = vector.load %arg7[%c0_14, %c0_15] : memref<16x32xf32, #tpu.memory_space<vmem>>, vector<16x32xf32>
      tpu.vector_store %arg7[%c0_14, %c0_15], %14 {strides = array<i32>} : memref<16x32xf32, #tpu.memory_space<vmem>>, vector<16x32xf32>,
    } else {
    }
    %c0 = arith.constant 0 : index
    %c0_1 = arith.constant 0 : index
    %3 = vector.load %arg2[%c0, %c0_1] : memref<16x32xf32, #tpu.memory_space<vmem>>, vector<16x32xf32>
    %c0_2 = arith.constant 0 : index
    %c0_3 = arith.constant 0 : index
    %4 = vector.load %arg3[%c0_2, %c0_3] : memref<128x32xf32, #tpu.memory_space<vmem>>, vector<128x32xf32>
    %cst = arith.constant dense<0.000000e+00> : vector<16x128xf32>
    %5 = tpu.matmul %3, %4, %cst {dimension_numbers = #tpu.dot_dimension_numbers<[1], [1], [0], [0], [0, 0, 1, 0], [], []>} : vector<16x32xf32>, vector<128x32xf32>, vector<16x128xf32> -> vector<16x128xf32>
    %c0_4 = arith.constant 0 : index
    %c0_5 = arith.constant 0 : index
    %6 = vector.load %arg7[%c0_4, %c0_5] : memref<16x32xf32, #tpu.memory_space<vmem>>, vector<16x32xf32>
    %c0_6 = arith.constant 0 : index
    %c0_7 = arith.constant 0 : index
    %7 = vector.load %arg4[%c0_6, %c0_7] : memref<32x128xf32, #tpu.memory_space<vmem>>, vector<32x128xf32>
    %cst_8 = arith.constant dense<0.000000e+00> : vector<16x32xf32>
    %8 = tpu.matmul %5, %7, %cst_8 {dimension_numbers = #tpu.dot_dimension_numbers<[1], [1], [0], [0], [0, 0, 1, 0], [], []>} : vector<16x128xf32>, vector<32x128xf32>, vector<16x32xf32> -> vector<16x32xf32>
    %9 = arith.addf %6, %8 : vector<16x32xf32>
    %c0_9 = arith.constant 0 : index
    %c0_10 = arith.constant 0 : index
    %10 = vector.load %arg7[%c0_9, %c0_10] : memref<16x32xf32, #tpu.memory_space<vmem>>, vector<16x32xf32>
    tpu.vector_store %arg7[%c0_9, %c0_10], %9 {strides = array<i32>} : memref<16x32xf32, #tpu.memory_space<vmem>>, vector<16x32xf32>,
    %c0_i32_11 = arith.constant 0 : i32
    %11 = arith.cmpi eq, %arg1, %c0_i32_11 : i32
    %12 = arith.extui %11 : i1 to i32
    %c0_i32_12 = arith.constant 0 : i32
    %13 = arith.cmpi ne, %12, %c0_i32_12 : i32
    scf.if %13 {
      %c0_13 = arith.constant 0 : index
      %c0_14 = arith.constant 0 : index
      %14 = vector.load %arg7[%c0_13, %c0_14] : memref<16x32xf32, #tpu.memory_space<vmem>>, vector<16x32xf32>
      %c0_15 = arith.constant 0 : index
      %c0_16 = arith.constant 0 : index
      %15 = vector.load %arg5[%c0_15, %c0_16] : memref<1x32xf32, #tpu.memory_space<vmem>>, vector<1x32xf32>
      %16 = vector.broadcast %15 : vector<1x32xf32> to vector<16x32xf32>
      %17 = arith.addf %14, %16 : vector<16x32xf32>
      %c0_17 = arith.constant 0 : index
      %c0_18 = arith.constant 0 : index
      %18 = vector.load %arg6[%c0_17, %c0_18] : memref<16x32xf32, #tpu.memory_space<vmem>>, vector<16x32xf32>
      tpu.vector_store %arg6[%c0_17, %c0_18], %17 {strides = array<i32>} : memref<16x32xf32, #tpu.memory_space<vmem>>, vector<16x32xf32>,
    } else {
    }
    return
  }
  func.func @transform_0(%arg0: i32, %arg1: i32) -> (i32, i32) {
    %c0_i32 = arith.constant 0 : i32
    %c0_i32_0 = arith.constant 0 : i32
    return %arg0, %c0_i32 : i32, i32
  }
  func.func @transform_1(%arg0: i32, %arg1: i32) -> (i32, i32) {
    %c0_i32 = arith.constant 0 : i32
    %c0_i32_0 = arith.constant 0 : i32
    return %arg1, %c0_i32 : i32, i32
  }
  func.func @transform_2(%arg0: i32, %arg1: i32) -> (i32, i32) {
    %c0_i32 = arith.constant 0 : i32
    %c0_i32_0 = arith.constant 0 : i32
    return %c0_i32, %arg1 : i32, i32
  }
  func.func @transform_3(%arg0: i32, %arg1: i32) -> (i32, i32) {
    %c0_i32 = arith.constant 0 : i32
    %c0_i32_0 = arith.constant 0 : i32
    %c0_i32_1 = arith.constant 0 : i32
    return %c0_i32, %c0_i32_0 : i32, i32
  }
  func.func @transform_4(%arg0: i32, %arg1: i32) -> (i32, i32) {
    %c0_i32 = arith.constant 0 : i32
    %c0_i32_0 = arith.constant 0 : i32
    return %arg0, %c0_i32 : i32, i32
  }
}

</mosaic_0001>

<llo_original>
// kernel: tpu_custom_call.1
$region0: #{tpu_custom_call.1}
  #allocation0 [shape = 'u32[]', space=smem, size = 0x4, offset = 0x4, fixed_abs, tag = 'smem constant byte address 0x4 - core index']
  #allocation1 [shape = 'u32[144,128]{1,0:T(1,128)}', space=vmem, size = 0x12000, scoped, tag = 'internal scratch']
  #allocation2 [shape = 'f32[16,32]{1,0:T(8,128)}', space=vmem, size = 0x2000, scoped, tag = 'scratch operand']
  %s0 = inlined_call_operand.hbm [shape: f32[16,32], index: 0, kind: input, shape index: {}]
  %s1 = inlined_call_operand.hbm [shape: f32[128,32], index: 1, kind: input, shape index: {}]
  %s2 = inlined_call_operand.hbm [shape: f32[32,128], index: 2, kind: input, shape index: {}]
  %s3 = inlined_call_operand.hbm [shape: f32[1,32], index: 3, kind: input, shape index: {}]
  %s4 = inlined_call_operand.hbm [shape: f32[16,32], index: 4, kind: output, shape index: {}]
  %s5 = sld [smem:[#allocation0]]
  $region50: #{tpu_custom_call.1} parent=0
    _
  %s7 = ssub.s32 1, %s5
  %s8 = scalar_select 0, %s7, %s5
  $region1: #{tpu_custom_call.1} parent=0
    #allocation3 [shape = 'u8[8192]{0}', space=vmem, size = 0x2000, scoped, tag = 'input window, operand 0, single buffered']
    #allocation4 [shape = 's32[1]{0}', space=sflag, size = 0x4, scoped, tag = 'scoped memory for tpu_custom_call.1']
    #allocation5 [shape = 's32[1]{0}', space=sflag, size = 0x4, scoped, tag = 'scoped memory for tpu_custom_call.1']
    #allocation6 [shape = 'u8[65536]{0}', space=vmem, size = 0x10000, scoped, tag = 'input window, operand 1, single buffered']
    #allocation7 [shape = 's32[1]{0}', space=sflag, size = 0x4, scoped, tag = 'scoped memory for tpu_custom_call.1']
    #allocation8 [shape = 'u8[16384]{0}', space=vmem, size = 0x4000, scoped, tag = 'input window, operand 2, single buffered']
    #allocation9 [shape = 'u8[512]{0}', space=vmem, size = 0x400, scoped, tag = 'input window, operand 3, single buffered']
    #allocation10 [shape = 's32[1]{0}', space=sflag, size = 0x4, scoped, tag = 'scoped memory for tpu_custom_call.1']
    #allocation11 [shape = 'u8[8192]{0}', space=vmem, size = 0x2000, scoped, tag = 'output window, operand 0, single buffered']
    %9 = vsyncpa [#allocation4], 0
    %10 = vsyncpa [#allocation7], 0
    %11 = vsyncpa [#allocation10], 0
    %12 = vsyncpa [#allocation5], 0
    // Predicated region
    $region2: #{tpu_custom_call.1} parent=1 // pred_check
      _
    $region3: #{tpu_custom_call.1} parent=1 // pred_check_branch
      %14 = sbr.rel (0) target = $region5
    $region4: #{tpu_custom_call.1} parent=1 // pred_region
      %s16 = ssub.s32 256, 256
      %17 = vsyncadd [#allocation4], %s16
      %s18 = sshll.u32 [#allocation3], 4
      %s19 = int_to_ptr.vmem [resolvable:$true] %s18
      %24 = dma.hbm_to_vmem [thread:$0]  %s0, 256, %s19, [#allocation4], 128, 128, 8
    $region5: #{tpu_custom_call.1} parent=1 // pred_fallthru
      _
    // Predicated region
    $region6: #{tpu_custom_call.1} parent=1 // pred_check
      _
    $region7: #{tpu_custom_call.1} parent=1 // pred_check_branch
      %26 = sbr.rel (0) target = $region9
    $region8: #{tpu_custom_call.1} parent=1 // pred_region
      %s28 = ssub.s32 2048, 2048
      %29 = vsyncadd [#allocation7], %s28
      %s30 = sshll.u32 [#allocation6], 4
      %s31 = int_to_ptr.vmem [resolvable:$true] %s30
      %36 = dma.hbm_to_vmem [thread:$0]  %s1, 2048, %s31, [#allocation7], 128, 128, 8
    $region9: #{tpu_custom_call.1} parent=1 // pred_fallthru
      _
    // Predicated region
    $region10: #{tpu_custom_call.1} parent=1 // pred_check
      _
    $region11: #{tpu_custom_call.1} parent=1 // pred_check_branch
      %38 = sbr.rel (0) target = $region13
    $region12: #{tpu_custom_call.1} parent=1 // pred_region
      %s40 = ssub.s32 512, 512
      %41 = vsyncadd [#allocation7], %s40
      %s42 = sshll.u32 [#allocation8], 4
      %s43 = int_to_ptr.vmem [resolvable:$true] %s42
      %48 = dma.hbm_to_vmem [thread:$0]  %s2, 512, %s43, [#allocation7], 128, 128, 8
    $region13: #{tpu_custom_call.1} parent=1 // pred_fallthru
      _
    // Predicated region
    $region14: #{tpu_custom_call.1} parent=1 // pred_check
      _
    $region15: #{tpu_custom_call.1} parent=1 // pred_check_branch
      %50 = sbr.rel (0) target = $region17
    $region16: #{tpu_custom_call.1} parent=1 // pred_region
      %s52 = ssub.s32 16, 16
      %53 = vsyncadd [#allocation10], %s52
      %s55 = sshll.u32 [#allocation9], 4
      %s56 = int_to_ptr.vmem [resolvable:$true] %s55
      %58 = dma.hbm_to_vmem [thread:$0]  %s3, 16, %s56, [#allocation10]
    $region17: #{tpu_custom_call.1} parent=1 // pred_fallthru
      _
    // Predicated region
    $region18: #{tpu_custom_call.1} parent=1 // pred_check
      _
    $region19: #{tpu_custom_call.1} parent=1 // pred_check_branch
      %60 = sbr.rel (0) target = $region21
    $region20: #{tpu_custom_call.1} parent=1 // pred_region
      %61 = dma.done [#allocation4], 256
    $region21: #{tpu_custom_call.1} parent=1 // pred_fallthru
      _
    // Predicated region
    $region22: #{tpu_custom_call.1} parent=1 // pred_check
      _
    $region23: #{tpu_custom_call.1} parent=1 // pred_check_branch
      %63 = sbr.rel (0) target = $region25
    $region24: #{tpu_custom_call.1} parent=1 // pred_region
      %64 = dma.done [#allocation7], 2048
    $region25: #{tpu_custom_call.1} parent=1 // pred_fallthru
      _
    // Predicated region
    $region26: #{tpu_custom_call.1} parent=1 // pred_check
      _
    $region27: #{tpu_custom_call.1} parent=1 // pred_check_branch
      %66 = sbr.rel (0) target = $region29
    $region28: #{tpu_custom_call.1} parent=1 // pred_region
      %67 = dma.done [#allocation7], 512
    $region29: #{tpu_custom_call.1} parent=1 // pred_fallthru
      _
    // Predicated region
    $region30: #{tpu_custom_call.1} parent=1 // pred_check
      _
    $region31: #{tpu_custom_call.1} parent=1 // pred_check_branch
      %69 = sbr.rel (0) target = $region33
    $region32: #{tpu_custom_call.1} parent=1 // pred_region
      %70 = dma.done [#allocation10], 16
    $region33: #{tpu_custom_call.1} parent=1 // pred_fallthru
      _
    %p71 = scmp.eq.s32.totalorder 0, 0
    // Predicated region
    $region34: #{tpu_custom_call.1} parent=1 // pred_check
      %p72 = pneg %p71
    $region35: #{tpu_custom_call.1} parent=1 // pred_check_branch
      %74 = sbr.rel (%p72) target = $region37
    $region36: #{tpu_custom_call.1} parent=1 // pred_region
      %vm75 = vcmask 261120
      %76 = vst.msk [vmem:[#allocation2] sm:$0xff] %vm75, 0.0
      %77 = vst.msk [vmem:[#allocation2 + $0x8] sm:$0xff] %vm75, 0.0
    $region37: #{tpu_custom_call.1} parent=1 // pred_fallthru
      _
    %v78 = vld [vmem:[#allocation3] sm:$0xff]
    %v79 = vld [vmem:[#allocation3 + $0x8] sm:$0xff]
    %v80 = vld [vmem:[#allocation6] sm:$0xff]
    %v81 = vld [vmem:[#allocation6 + $0x8] sm:$0xff]
    %v82 = vld [vmem:[#allocation6 + $0x10] sm:$0xff]
    %v83 = vld [vmem:[#allocation6 + $0x18] sm:$0xff]
    %v84 = vld [vmem:[#allocation6 + $0x20] sm:$0xff]
    %v85 = vld [vmem:[#allocation6 + $0x28] sm:$0xff]
    %v86 = vld [vmem:[#allocation6 + $0x30] sm:$0xff]
    %v87 = vld [vmem:[#allocation6 + $0x38] sm:$0xff]
    %v88 = vld [vmem:[#allocation6 + $0x40] sm:$0xff]
    %v89 = vld [vmem:[#allocation6 + $0x48] sm:$0xff]
    %v90 = vld [vmem:[#allocation6 + $0x50] sm:$0xff]
    %v91 = vld [vmem:[#allocation6 + $0x58] sm:$0xff]
    %v92 = vld [vmem:[#allocation6 + $0x60] sm:$0xff]
    %v93 = vld [vmem:[#allocation6 + $0x68] sm:$0xff]
    %v94 = vld [vmem:[#allocation6 + $0x70] sm:$0xff]
    %v95 = vld [vmem:[#allocation6 + $0x78] sm:$0xff]
    %vm96 = vcmask 261120
    %v98 = vsel %vm96, %v78, 0
    %v101 = vsel %vm96, %v79, 0
    %v104 = vsel %vm96, %v80, 0
    %v107 = vsel %vm96, %v81, 0
    %v110 = vsel %vm96, %v82, 0
    %v113 = vsel %vm96, %v83, 0
    %v116 = vsel %vm96, %v84, 0
    %v119 = vsel %vm96, %v85, 0
    %v122 = vsel %vm96, %v86, 0
    %v125 = vsel %vm96, %v87, 0
    %v128 = vsel %vm96, %v88, 0
    %v131 = vsel %vm96, %v89, 0
    %v134 = vsel %vm96, %v90, 0
    %v137 = vsel %vm96, %v91, 0
    %v140 = vsel %vm96, %v92, 0
    %v143 = vsel %vm96, %v93, 0
    %v146 = vsel %vm96, %v94, 0
    %v149 = vsel %vm96, %v95, 0
    %151 = vmatprep.subr.mxu0 0.0
    %152 = vmatpush1.xpose.msra.mxu0 %v104
    %153 = vmatprep.subr.mxu0 0.0
    %154 = vmatpush1.xpose.msra.mxu0 %v107
    %155 = vmatprep.subr.mxu0 0.0
    %156 = vmatpush1.xpose.msra.mxu0 %v110
    %157 = vmatprep.subr.mxu0 0.0
    %158 = vmatpush1.xpose.msra.mxu0 %v113
    %159 = vmatprep.subr.mxu0 0.0
    %160 = vmatpush1.xpose.msra.mxu0 %v116
    %161 = vmatprep.subr.mxu0 0.0
    %162 = vmatpush1.xpose.msra.mxu0 %v119
    %163 = vmatprep.subr.mxu0 0.0
    %164 = vmatpush1.xpose.msra.mxu0 %v122
    %165 = vmatprep.subr.mxu0 0.0
    %166 = vmatpush1.xpose.msra.mxu0 %v125
    %167 = vmatprep.subr.mxu0 0.0
    %168 = vmatpush1.xpose.msra.mxu0 %v128
    %169 = vmatprep.subr.mxu0 0.0
    %170 = vmatpush1.xpose.msra.mxu0 %v131
    %171 = vmatprep.subr.mxu0 0.0
    %172 = vmatpush1.xpose.msra.mxu0 %v134
    %173 = vmatprep.subr.mxu0 0.0
    %174 = vmatpush1.xpose.msra.mxu0 %v137
    %175 = vmatprep.subr.mxu0 0.0
    %176 = vmatpush1.xpose.msra.mxu0 %v140
    %177 = vmatprep.subr.mxu0 0.0
    %178 = vmatpush1.xpose.msra.mxu0 %v143
    %179 = vmatprep.subr.mxu0 0.0
    %180 = vmatpush1.xpose.msra.mxu0 %v146
    %181 = vmatprep.subr.mxu0 0.0
    %182 = vmatpush1.xpose.msra.mxu0 %v149
    %183 = vmatprep.subr.mxu0 0.0
    %184 = vmatpush1.xpose.msra.mxu0 0.0
    %185 = vmatprep.subr.mxu0 0.0
    %186 = vmatpush1.xpose.msra.mxu0 0.0
    %187 = vmatprep.subr.mxu0 0.0
    %188 = vmatpush1.xpose.msra.mxu0 0.0
    %189 = vmatprep.subr.mxu0 0.0
    %190 = vmatpush1.xpose.msra.mxu0 0.0
    %191 = vmatprep.subr.mxu0 0.0
    %192 = vmatpush1.xpose.msra.mxu0 0.0
    %193 = vmatprep.subr.mxu0 0.0
    %194 = vmatpush1.xpose.msra.mxu0 0.0
    %195 = vmatprep.subr.mxu0 0.0
    %196 = vmatpush1.xpose.msra.mxu0 0.0
    %197 = vmatprep.subr.mxu0 0.0
    %198 = vmatpush1.xpose.msra.mxu0 0.0
    %199 = vmatprep.subr.mxu0 0.0
    %200 = vmatpush1.xpose.msra.mxu0 0.0
    %201 = vmatprep.subr.mxu0 0.0
    %202 = vmatpush1.xpose.msra.mxu0 0.0
    %203 = vmatprep.subr.mxu0 0.0
    %204 = vmatpush1.xpose.msra.mxu0 0.0
    %205 = vmatprep.subr.mxu0 0.0
    %206 = vmatpush1.xpose.msra.mxu0 0.0
    %207 = vmatprep.subr.mxu0 0.0
    %208 = vmatpush1.xpose.msra.mxu0 0.0
    %209 = vmatprep.subr.mxu0 0.0
    %210 = vmatpush1.xpose.msra.mxu0 0.0
    %211 = vmatprep.subr.mxu0 0.0
    %212 = vmatpush1.xpose.msra.mxu0 0.0
    %213 = vmatprep.subr.mxu0 0.0
    %214 = vmatpush1.xpose.msra.mxu0 0.0
    %215 = vmatprep.mubr.f32.mxu0 0.0
    %216 = vmatmul.mubr.f32.gmra.mrb[0].mxu0 %v98
    %v217 = vpop.f32.mrb[0].mxu0
    %v218 = vadd.f32 0.0, %v217
    %v219 = vpop.f32.mrb[0].mxu0
    %220 = vmatprep.mubr.f32.mxu0 0.0
    %221 = vmatmul.mubr.f32.gmra.mrb[0].mxu0 %v101
    %v222 = vpop.f32.mrb[0].mxu0
    %v223 = vadd.f32 0.0, %v222
    %v224 = vpop.f32.mrb[0].mxu0
    %225 = vdwg.mxu0
    %v226 = vld [vmem:[#allocation2] sm:$0xff]
    %v227 = vld [vmem:[#allocation2 + $0x8] sm:$0xff]
    %v228 = vld [vmem:[#allocation8] sm:$0xff]
    %v229 = vld [vmem:[#allocation8 + $0x8] sm:$0xff]
    %v230 = vld [vmem:[#allocation8 + $0x10] sm:$0xff]
    %v231 = vld [vmem:[#allocation8 + $0x18] sm:$0xff]
    %232 = vmatprep.subr.mxu0 0.0
    %233 = vmatpush1.xpose.msra.mxu0 %v228
    %234 = vmatprep.subr.mxu0 0.0
    %235 = vmatpush1.xpose.msra.mxu0 %v229
    %236 = vmatprep.subr.mxu0 0.0
    %237 = vmatpush1.xpose.msra.mxu0 %v230
    %238 = vmatprep.subr.mxu0 0.0
    %239 = vmatpush1.xpose.msra.mxu0 %v231
    %240 = vmatprep.subr.mxu0 0.0
    %241 = vmatpush1.xpose.msra.mxu0 0.0
    %242 = vmatprep.subr.mxu0 0.0
    %243 = vmatpush1.xpose.msra.mxu0 0.0
    %244 = vmatprep.subr.mxu0 0.0
    %245 = vmatpush1.xpose.msra.mxu0 0.0
    %246 = vmatprep.subr.mxu0 0.0
    %247 = vmatpush1.xpose.msra.mxu0 0.0
    %248 = vmatprep.subr.mxu0 0.0
    %249 = vmatpush1.xpose.msra.mxu0 0.0
    %250 = vmatprep.subr.mxu0 0.0
    %251 = vmatpush1.xpose.msra.mxu0 0.0
    %252 = vmatprep.subr.mxu0 0.0
    %253 = vmatpush1.xpose.msra.mxu0 0.0
    %254 = vmatprep.subr.mxu0 0.0
    %255 = vmatpush1.xpose.msra.mxu0 0.0
    %256 = vmatprep.subr.mxu0 0.0
    %257 = vmatpush1.xpose.msra.mxu0 0.0
    %258 = vmatprep.subr.mxu0 0.0
    %259 = vmatpush1.xpose.msra.mxu0 0.0
    %260 = vmatprep.subr.mxu0 0.0
    %261 = vmatpush1.xpose.msra.mxu0 0.0
    %262 = vmatprep.subr.mxu0 0.0
    %263 = vmatpush1.xpose.msra.mxu0 0.0
    %264 = vmatprep.subr.mxu0 0.0
    %265 = vmatpush1.xpose.msra.mxu0 0.0
    %266 = vmatprep.subr.mxu0 0.0
    %267 = vmatpush1.xpose.msra.mxu0 0.0
    %268 = vmatprep.subr.mxu0 0.0
    %269 = vmatpush1.xpose.msra.mxu0 0.0
    %270 = vmatprep.subr.mxu0 0.0
    %271 = vmatpush1.xpose.msra.mxu0 0.0
    %272 = vmatprep.subr.mxu0 0.0
    %273 = vmatpush1.xpose.msra.mxu0 0.0
    %274 = vmatprep.subr.mxu0 0.0
    %275 = vmatpush1.xpose.msra.mxu0 0.0
    %276 = vmatprep.subr.mxu0 0.0
    %277 = vmatpush1.xpose.msra.mxu0 0.0
    %278 = vmatprep.subr.mxu0 0.0
    %279 = vmatpush1.xpose.msra.mxu0 0.0
    %280 = vmatprep.subr.mxu0 0.0
    %281 = vmatpush1.xpose.msra.mxu0 0.0
    %282 = vmatprep.subr.mxu0 0.0
    %283 = vmatpush1.xpose.msra.mxu0 0.0
    %284 = vmatprep.subr.mxu0 0.0
    %285 = vmatpush1.xpose.msra.mxu0 0.0
    %286 = vmatprep.subr.mxu0 0.0
    %287 = vmatpush1.xpose.msra.mxu0 0.0
    %288 = vmatprep.subr.mxu0 0.0
    %289 = vmatpush1.xpose.msra.mxu0 0.0
    %290 = vmatprep.subr.mxu0 0.0
    %291 = vmatpush1.xpose.msra.mxu0 0.0
    %292 = vmatprep.subr.mxu0 0.0
    %293 = vmatpush1.xpose.msra.mxu0 0.0
    %294 = vmatprep.subr.mxu0 0.0
    %295 = vmatpush1.xpose.msra.mxu0 0.0
    %296 = vmatprep.mubr.f32.mxu0 0.0
    %297 = vmatmul.mubr.f32.gmra.mrb[0].mxu0 %v218
    %v298 = vpop.f32.mrb[0].mxu0
    %v299 = vadd.f32 0.0, %v298
    %v300 = vpop.f32.mrb[0].mxu0
    %301 = vmatprep.mubr.f32.mxu0 0.0
    %302 = vmatmul.mubr.f32.gmra.mrb[0].mxu0 %v223
    %v303 = vpop.f32.mrb[0].mxu0
    %v304 = vadd.f32 0.0, %v303
    %v305 = vpop.f32.mrb[0].mxu0
    %306 = vdwg.mxu0
    %v307 = vadd.f32 %v226, %v299
    %v308 = vadd.f32 %v227, %v304
    %309 = vst.msk [vmem:[#allocation2] sm:$0xff] %vm96, %v307
    %310 = vst.msk [vmem:[#allocation2 + $0x8] sm:$0xff] %vm96, %v308
    // Predicated region
    $region38: #{tpu_custom_call.1} parent=1 // pred_check
      %p311 = pneg %p71
    $region39: #{tpu_custom_call.1} parent=1 // pred_check_branch
      %313 = sbr.rel (%p311) target = $region41
    $region40: #{tpu_custom_call.1} parent=1 // pred_region
      %v314 = vld [vmem:[#allocation2] sm:$0xff]
      %v315 = vld [vmem:[#allocation2 + $0x8] sm:$0xff]
      %v316 = vld [vmem:[#allocation9] sm:$0x1]
      %v318 = vlaneseq
      %v319 = vshrl.u32 %v318, 7
      %v320 = vsub.s32 0, %v319
      %v321 = vrot.slane %v316, %v320
      %v323 = vadd.f32 %v314, %v321
      %v324 = vadd.f32 %v315, %v321
      %325 = vst.msk [vmem:[#allocation11] sm:$0xff] %vm96, %v323
      %326 = vst.msk [vmem:[#allocation11 + $0x8] sm:$0xff] %vm96, %v324
    $region41: #{tpu_custom_call.1} parent=1 // pred_fallthru
      _
    // Predicated region
    $region42: #{tpu_custom_call.1} parent=1 // pred_check
      _
    $region43: #{tpu_custom_call.1} parent=1 // pred_check_branch
      %328 = sbr.rel (0) target = $region45
    $region44: #{tpu_custom_call.1} parent=1 // pred_region
      %s330 = ssub.s32 256, 256
      %331 = vsyncadd [#allocation5], %s330
      %s332 = sshll.u32 [#allocation11], 4
      %s333 = int_to_ptr.vmem [resolvable:$true] %s332
      %338 = dma.vmem_to_hbm [thread:$0]  %s333, 256, %s4, [#allocation5], 128, 128, 8
    $region45: #{tpu_custom_call.1} parent=1 // pred_fallthru
      _
    // Predicated region
    $region46: #{tpu_custom_call.1} parent=1 // pred_check
      _
    $region47: #{tpu_custom_call.1} parent=1 // pred_check_branch
      %340 = sbr.rel (0) target = $region49
    $region48: #{tpu_custom_call.1} parent=1 // pred_region
      %341 = dma.done [#allocation5], 256
    $region49: #{tpu_custom_call.1} parent=1 // pred_fallthru
      _
    %342 = vsyncpa [#allocation4], 1
    %343 = vsyncpa [#allocation7], 1
    %344 = vsyncpa [#allocation10], 1
    %345 = vsyncpa [#allocation5], 1

</llo_original>
